<compile_context>
chip_gen: v5e
topology: v5e:2x2
jax: 0.10.0
libtpu: 0.0.40
codegen_flags: <defaults>
</compile_context>

<pallas_src>
import jax
import jax.numpy as jnp
from jax.experimental import pallas as pl
from jax.experimental.pallas import tpu as pltpu


def _stats_kernel(x_ref, mean_ref, var_ref, count_ref, eps_ref, bcount_ref,
                  mean_out_ref, var_out_ref, scale_ref, shift_ref,
                  count_out_ref, acc_mean, acc_m2):
    """Pass 1: accumulate per-channel batch stats across HW tiles (Chan merge),
    Welford-merge into the running buffers, emit normalization constants."""
    i = pl.program_id(0)
    n_tiles = pl.num_programs(0)

    @pl.when(i == 0)
    def _init():
        acc_mean[...] = jnp.zeros_like(acc_mean)
        acc_m2[...] = jnp.zeros_like(acc_m2)

    x = x_ref[...].astype(jnp.float32)               # (B, C, T)
    n_t = jnp.float32(x.shape[0] * x.shape[2])       # elems per channel / tile

    tile_mean = jnp.sum(x, axis=(0, 2), keepdims=True) / n_t      # (1, C, 1)
    diff = x - tile_mean
    tile_m2 = jnp.sum(diff * diff, axis=(0, 2), keepdims=True)    # (1, C, 1)

    # Chan parallel-variance merge of this tile into the running accumulator
    # (numerically robust vs. sum / sum-of-squares).
    cnt_prev = i.astype(jnp.float32) * n_t
    cnt_tot = cnt_prev + n_t
    delta = tile_mean - acc_mean[...]
    acc_m2[...] = acc_m2[...] + tile_m2 + delta * delta * (cnt_prev * n_t / cnt_tot)
    acc_mean[...] = acc_mean[...] + delta * (n_t / cnt_tot)

    @pl.when(i == n_tiles - 1)
    def _finalize():
        new_mean = acc_mean[...]
        new_var = acc_m2[...] / cnt_tot      # biased variance over B*H*W
        count = count_ref[0]                 # running count (scalar, SMEM)
        new_count = bcount_ref[0]            # = B (training) or 0.0 (eval)
        eps = eps_ref[0]
        mean = mean_ref[...]                 # (1, C, 1) running mean
        var = var_ref[...]                   # (1, C, 1) running var

        # Welford merge (welford_update in the torch code).
        tot = count + new_count
        tot_safe = jnp.maximum(tot, jnp.float32(1e-20))   # guard 0/0 -> NaN
        m2 = var * count + new_var * new_count + \
            (new_mean - mean) ** 2 * (count * new_count / tot_safe)
        var_u = m2 / tot_safe
        mean_u = (count * mean + new_count * new_mean) / tot_safe

        inv_stdev = jax.lax.rsqrt(jnp.maximum(var_u, eps))
        mean_out_ref[...] = mean_u
        var_out_ref[...] = var_u
        scale_ref[...] = inv_stdev
        shift_ref[...] = -mean_u * inv_stdev
        count_out_ref[0] = tot


def _normalize_kernel(x_ref, scale_ref, shift_ref, y_ref):
    """Pass 2: y = x*scale + shift  (= (x - mean) * rsqrt(max(var, eps)))."""
    x = x_ref[...].astype(jnp.float32)
    y_ref[...] = (x * scale_ref[...] + shift_ref[...]).astype(y_ref.dtype)


def _choose_hw_tile(hw, b, c, itemsize, target_bytes=2 << 20, max_lanes=4096):
    """Largest multiple-of-128 divisor of hw whose (b, c_pad, tile) block fits
    the per-buffer budget (keeps double-buffered x + y tiles well inside the
    default scoped-VMEM limit on v5e/v6e/v7x, accounting for C<8 padding)."""
    c_pad = -(-max(c, 8) // 8) * 8            # sublane padding when C < 8
    divisors = [t for t in range(128, hw + 1, 128) if hw % t == 0]
    if not divisors:
        return hw                              # tiny / odd spatial: single block
    fitting = [t for t in divisors
               if t <= max_lanes and b * c_pad * t * itemsize <= target_bytes]
    return max(fitting) if fitting else min(divisors)


def running_mean_and_var_forward(x, mean, var, count, eps, training=True,
                                 hw_tile=None):
    """Functional forward of RunningMeanAndVar (training: update + normalize).

    x:     (B, C, H, W)          input (NCHW, like the PyTorch module)
    mean:  (1, C, 1, 1) float32  running mean buffer
    var:   (1, C, 1, 1) float32  running var buffer
    count: ()           float32  running count buffer
    eps:   ()           float32

    Returns (y, new_mean, new_var, new_count) with the same buffer shapes.
    """
    # TODO(synk): the distributed all_reduce path of update() has no
    # single-device Pallas equivalent and is not implemented here.
    B, C, H, W = x.shape
    HW = H * W

    # Free, contiguous reshape -- no NCHW transpose, no extra HBM traffic.
    x3 = x.reshape(B, C, HW)
    mean3 = mean.reshape(1, C, 1).astype(jnp.float32)
    var3 = var.reshape(1, C, 1).astype(jnp.float32)
    count1 = jnp.reshape(count, (1,)).astype(jnp.float32)
    eps1 = jnp.reshape(eps, (1,)).astype(jnp.float32)
    # new_count = batch size B in training; 0.0 makes the Welford merge a no-op
    # (eval-mode forward == normalize with the current buffers).
    bcount1 = jnp.full((1,), float(B) if training else 0.0, jnp.float32)

    if hw_tile is None:
        hw_tile = _choose_hw_tile(HW, B, C, jnp.dtype(x.dtype).itemsize)
    assert HW % hw_tile == 0, "hw_tile must divide H*W"
    n_tiles = HW // hw_tile

    x_spec = pl.BlockSpec((B, C, hw_tile), lambda i: (0, 0, i))
    stat_spec = pl.BlockSpec((1, C, 1), lambda i: (0, 0, 0))
    smem_spec = pl.BlockSpec(memory_space=pltpu.MemorySpace.SMEM)

    # ---- pass 1: per-channel stats + Welford merge + normalization consts ----
    mean_u, var_u, scale, shift, count_u = pl.pallas_call(
        _stats_kernel,
        out_shape=(
            jax.ShapeDtypeStruct((1, C, 1), jnp.float32),   # updated mean
            jax.ShapeDtypeStruct((1, C, 1), jnp.float32),   # updated var
            jax.ShapeDtypeStruct((1, C, 1), jnp.float32),   # scale
            jax.ShapeDtypeStruct((1, C, 1), jnp.float32),   # shift
            jax.ShapeDtypeStruct((1,), jnp.float32),        # updated count
        ),
        grid=(n_tiles,),
        in_specs=[x_spec, stat_spec, stat_spec, smem_spec, smem_spec, smem_spec],
        out_specs=(stat_spec, stat_spec, stat_spec, stat_spec, smem_spec),
        scratch_shapes=[pltpu.VMEM((1, C, 1), jnp.float32),
                        pltpu.VMEM((1, C, 1), jnp.float32)],
        compiler_params=pltpu.CompilerParams(
            dimension_semantics=("arbitrary",)),
    )(x3, mean3, var3, count1, eps1, bcount1)

    # ---- pass 2: normalize with the updated stats (tiles are independent) ----
    y3 = pl.pallas_call(
        _normalize_kernel,
        out_shape=jax.ShapeDtypeStruct((B, C, HW), x.dtype),
        grid=(n_tiles,),
        in_specs=[x_spec, stat_spec, stat_spec],
        out_specs=x_spec,
        compiler_params=pltpu.CompilerParams(
            dimension_semantics=("parallel",)),
    )(x3, scale, shift)

    return (y3.reshape(B, C, H, W),
            mean_u.reshape(1, C, 1, 1),
            var_u.reshape(1, C, 1, 1),
            count_u.reshape(()))


def _reference_forward(x, mean, var, count, eps):
    """Pure-JAX reference mirroring the PyTorch module (training forward)."""
    B, C, H, W = x.shape
    x_cf = jnp.transpose(x, (1, 0, 2, 3)).reshape(C, -1).astype(jnp.float32)
    new_count = jnp.float32(B)
    new_mean = x_cf.mean(-1).reshape(1, C, 1, 1)
    new_var = ((x_cf - new_mean.reshape(C, 1)) ** 2).mean(-1).reshape(1, C, 1, 1)
    tot = count + new_count
    m2 = var * count + new_var * new_count + \
        (new_mean - mean) ** 2 * count * new_count / tot
    var_u = m2 / tot
    mean_u = (count * mean + new_count * new_mean) / tot
    inv = jax.lax.rsqrt(jnp.maximum(var_u, eps))
    return (x - mean_u) * inv, mean_u, var_u, tot


if __name__ == "__main__":
    key = jax.random.PRNGKey(0)
    B, C, H, W = 2, 4, 16, 16
    x = jax.random.normal(key, (B, C, H, W), jnp.float32) * 2.0 + 0.5

    # deterministic buffer init, matching __init__(n_channels=4)
    mean0 = jnp.zeros((1, C, 1, 1), jnp.float32)
    var0 = jnp.ones((1, C, 1, 1), jnp.float32)
    count0 = jnp.float32(0.01)   # initial_count
    eps0 = jnp.float32(0.01)     # eps

    y_ref, m_ref, v_ref, c_ref = _reference_forward(x, mean0, var0, count0, eps0)

    # Run once with the auto-chosen tile (single block at this small shape) and
    # once with a forced 128-lane tile to exercise the multi-tile Chan merge.
    for tile in (None, 128):
        y, m_new, v_new, c_new = running_mean_and_var_forward(
            x, mean0, var0, count0, eps0, training=True, hw_tile=tile)
        jax.block_until_ready((y, m_new, v_new, c_new))
        assert jnp.allclose(y, y_ref, rtol=1e-4, atol=1e-4)
        assert jnp.allclose(m_new, m_ref, rtol=1e-4, atol=1e-5)
        assert jnp.allclose(v_new, v_ref, rtol=1e-4, atol=1e-5)
        assert jnp.allclose(c_new, c_ref, rtol=1e-5, atol=1e-6)

    print("KERNEL_OK")
</pallas_src>

<mosaic_0001>
module attributes {stable_mosaic.version = 11 : i64} {
  func.func @_stats_kernel(%arg0: i32, %arg1: memref<2x4x256xf32, #tpu.memory_space<vmem>>, %arg2: memref<1x4x1xf32, #tpu.memory_space<vmem>>, %arg3: memref<1x4x1xf32, #tpu.memory_space<vmem>>, %arg4: memref<1xf32, #tpu.memory_space<smem>>, %arg5: memref<1xf32, #tpu.memory_space<smem>>, %arg6: memref<1xf32, #tpu.memory_space<smem>>, %arg7: memref<1x4x1xf32, #tpu.memory_space<vmem>>, %arg8: memref<1x4x1xf32, #tpu.memory_space<vmem>>, %arg9: memref<1x4x1xf32, #tpu.memory_space<vmem>>, %arg10: memref<1x4x1xf32, #tpu.memory_space<vmem>>, %arg11: memref<1xf32, #tpu.memory_space<smem>>, %arg12: memref<1x4x1xf32, #tpu.memory_space<vmem>>, %arg13: memref<1x4x1xf32, #tpu.memory_space<vmem>>) attributes {dimension_semantics = [#tpu.dimension_semantics<arbitrary>], iteration_bounds = array<i64: 1>, scalar_prefetch = 0 : i64, scratch_operands = 2 : i64, tpu.core_type = #tpu.core_type<tc>, window_params = [{transform_indices = @transform_0, window_bounds = array<i64: 2, 4, 256>}, {pipeline_mode = #tpu.pipeline_mode<synchronous>, transform_indices = @transform_1, window_bounds = array<i64: 1, 4, 1>}, {pipeline_mode = #tpu.pipeline_mode<synchronous>, transform_indices = @transform_2, window_bounds = array<i64: 1, 4, 1>}, {transform_indices = @transform_3, window_bounds = array<i64: 1>}, {transform_indices = @transform_4, window_bounds = array<i64: 1>}, {transform_indices = @transform_5, window_bounds = array<i64: 1>}, {pipeline_mode = #tpu.pipeline_mode<synchronous>, transform_indices = @transform_6, window_bounds = array<i64: 1, 4, 1>}, {pipeline_mode = #tpu.pipeline_mode<synchronous>, transform_indices = @transform_7, window_bounds = array<i64: 1, 4, 1>}, {pipeline_mode = #tpu.pipeline_mode<synchronous>, transform_indices = @transform_8, window_bounds = array<i64: 1, 4, 1>}, {pipeline_mode = #tpu.pipeline_mode<synchronous>, transform_indices = @transform_9, window_bounds = array<i64: 1, 4, 1>}, {transform_indices = @transform_10, window_bounds = array<i64: 1>}]} {
    %c0_i32 = arith.constant 0 : i32
    %0 = arith.cmpi eq, %arg0, %c0_i32 : i32
    %1 = arith.extui %0 : i1 to i32
    %c0_i32_0 = arith.constant 0 : i32
    %2 = arith.cmpi ne, %1, %c0_i32_0 : i32
    scf.if %2 {
      %cst_26 = arith.constant 0.000000e+00 : f32
      %36 = vector.broadcast %cst_26 : f32 to vector<1x4x1xf32>
      %c0_27 = arith.constant 0 : index
      %c0_28 = arith.constant 0 : index
      %c0_29 = arith.constant 0 : index
      %37 = vector.load %arg12[%c0_27, %c0_28, %c0_29] : memref<1x4x1xf32, #tpu.memory_space<vmem>>, vector<1x4x1xf32>
      tpu.vector_store %arg12[%c0_27, %c0_28, %c0_29], %36 {strides = array<i32>} : memref<1x4x1xf32, #tpu.memory_space<vmem>>, vector<1x4x1xf32>,
      %cst_30 = arith.constant 0.000000e+00 : f32
      %38 = vector.broadcast %cst_30 : f32 to vector<1x4x1xf32>
      %c0_31 = arith.constant 0 : index
      %c0_32 = arith.constant 0 : index
      %c0_33 = arith.constant 0 : index
      %39 = vector.load %arg13[%c0_31, %c0_32, %c0_33] : memref<1x4x1xf32, #tpu.memory_space<vmem>>, vector<1x4x1xf32>
      tpu.vector_store %arg13[%c0_31, %c0_32, %c0_33], %38 {strides = array<i32>} : memref<1x4x1xf32, #tpu.memory_space<vmem>>, vector<1x4x1xf32>,
    } else {
    }
    %c0 = arith.constant 0 : index
    %c0_1 = arith.constant 0 : index
    %c0_2 = arith.constant 0 : index
    %3 = vector.load %arg1[%c0, %c0_1, %c0_2] : memref<2x4x256xf32, #tpu.memory_space<vmem>>, vector<2x4x256xf32>
    %cst = arith.constant dense<0.000000e+00> : vector<4xf32>
    %4 = vector.multi_reduction <add>, %3, %cst [0, 2] : vector<2x4x256xf32> to vector<4xf32>
    %5 = vector.shape_cast %4 : vector<4xf32> to vector<1x4x1xf32>
    %cst_3 = arith.constant 5.120000e+02 : f32
    %6 = vector.broadcast %cst_3 : f32 to vector<1x4x1xf32>
    %7 = arith.divf %5, %6 : vector<1x4x1xf32>
    %8 = vector.broadcast %7 : vector<1x4x1xf32> to vector<2x4x256xf32>
    %9 = arith.subf %3, %8 : vector<2x4x256xf32>
    %10 = arith.mulf %9, %9 : vector<2x4x256xf32>
    %cst_4 = arith.constant dense<0.000000e+00> : vector<4xf32>
    %11 = vector.multi_reduction <add>, %10, %cst_4 [0, 2] : vector<2x4x256xf32> to vector<4xf32>
    %12 = vector.shape_cast %11 : vector<4xf32> to vector<1x4x1xf32>
    %13 = arith.sitofp %arg0 : i32 to f32
    %cst_5 = arith.constant 5.120000e+02 : f32
    %14 = arith.mulf %13, %cst_5 : f32
    %cst_6 = arith.constant 5.120000e+02 : f32
    %15 = arith.addf %14, %cst_6 : f32
    %c0_7 = arith.constant 0 : index
    %c0_8 = arith.constant 0 : index
    %c0_9 = arith.constant 0 : index
    %16 = vector.load %arg12[%c0_7, %c0_8, %c0_9] : memref<1x4x1xf32, #tpu.memory_space<vmem>>, vector<1x4x1xf32>
    %17 = arith.subf %7, %16 : vector<1x4x1xf32>
    %c0_10 = arith.constant 0 : index
    %c0_11 = arith.constant 0 : index
    %c0_12 = arith.constant 0 : index
    %18 = vector.load %arg13[%c0_10, %c0_11, %c0_12] : memref<1x4x1xf32, #tpu.memory_space<vmem>>, vector<1x4x1xf32>
    %19 = arith.addf %18, %12 : vector<1x4x1xf32>
    %20 = arith.mulf %17, %17 : vector<1x4x1xf32>
    %cst_13 = arith.constant 5.120000e+02 : f32
    %21 = arith.mulf %14, %cst_13 : f32
    %22 = arith.divf %21, %15 : f32
    %23 = vector.broadcast %22 : f32 to vector<1x4x1xf32>
    %24 = arith.mulf %20, %23 : vector<1x4x1xf32>
    %25 = arith.addf %19, %24 : vector<1x4x1xf32>
    %c0_14 = arith.constant 0 : index
    %c0_15 = arith.constant 0 : index
    %c0_16 = arith.constant 0 : index
    %26 = vector.load %arg13[%c0_14, %c0_15, %c0_16] : memref<1x4x1xf32, #tpu.memory_space<vmem>>, vector<1x4x1xf32>
    tpu.vector_store %arg13[%c0_14, %c0_15, %c0_16], %25 {strides = array<i32>} : memref<1x4x1xf32, #tpu.memory_space<vmem>>, vector<1x4x1xf32>,
    %c0_17 = arith.constant 0 : index
    %c0_18 = arith.constant 0 : index
    %c0_19 = arith.constant 0 : index
    %27 = vector.load %arg12[%c0_17, %c0_18, %c0_19] : memref<1x4x1xf32, #tpu.memory_space<vmem>>, vector<1x4x1xf32>
    %cst_20 = arith.constant 5.120000e+02 : f32
    %28 = arith.divf %cst_20, %15 : f32
    %29 = vector.broadcast %28 : f32 to vector<1x4x1xf32>
    %30 = arith.mulf %17, %29 : vector<1x4x1xf32>
    %31 = arith.addf %27, %30 : vector<1x4x1xf32>
    %c0_21 = arith.constant 0 : index
    %c0_22 = arith.constant 0 : index
    %c0_23 = arith.constant 0 : index
    %32 = vector.load %arg12[%c0_21, %c0_22, %c0_23] : memref<1x4x1xf32, #tpu.memory_space<vmem>>, vector<1x4x1xf32>
    tpu.vector_store %arg12[%c0_21, %c0_22, %c0_23], %31 {strides = array<i32>} : memref<1x4x1xf32, #tpu.memory_space<vmem>>, vector<1x4x1xf32>,
    %c0_i32_24 = arith.constant 0 : i32
    %33 = arith.cmpi eq, %arg0, %c0_i32_24 : i32
    %34 = arith.extui %33 : i1 to i32
    %c0_i32_25 = arith.constant 0 : i32
    %35 = arith.cmpi ne, %34, %c0_i32_25 : i32
    scf.if %35 {
      %c0_26 = arith.constant 0 : index
      %c0_27 = arith.constant 0 : index
      %c0_28 = arith.constant 0 : index
      %36 = vector.load %arg12[%c0_26, %c0_27, %c0_28] : memref<1x4x1xf32, #tpu.memory_space<vmem>>, vector<1x4x1xf32>
      %c0_29 = arith.constant 0 : index
      %c0_30 = arith.constant 0 : index
      %c0_31 = arith.constant 0 : index
      %37 = vector.load %arg13[%c0_29, %c0_30, %c0_31] : memref<1x4x1xf32, #tpu.memory_space<vmem>>, vector<1x4x1xf32>
      %38 = vector.broadcast %15 : f32 to vector<1x4x1xf32>
      %39 = arith.divf %37, %38 : vector<1x4x1xf32>
      %c0_32 = arith.constant 0 : index
      %40 = memref.load %arg4[%c0_32] : memref<1xf32, #tpu.memory_space<smem>>
      %c0_33 = arith.constant 0 : index
      %41 = memref.load %arg6[%c0_33] : memref<1xf32, #tpu.memory_space<smem>>
      %c0_34 = arith.constant 0 : index
      %42 = memref.load %arg5[%c0_34] : memref<1xf32, #tpu.memory_space<smem>>
      %c0_35 = arith.constant 0 : index
      %c0_36 = arith.constant 0 : index
      %c0_37 = arith.constant 0 : index
      %43 = vector.load %arg2[%c0_35, %c0_36, %c0_37] : memref<1x4x1xf32, #tpu.memory_space<vmem>>, vector<1x4x1xf32>
      %c0_38 = arith.constant 0 : index
      %c0_39 = arith.constant 0 : index
      %c0_40 = arith.constant 0 : index
      %44 = vector.load %arg3[%c0_38, %c0_39, %c0_40] : memref<1x4x1xf32, #tpu.memory_space<vmem>>, vector<1x4x1xf32>
      %45 = arith.addf %40, %41 : f32
      %cst_41 = arith.constant 9.99999968E-21 : f32
      %46 = arith.maximumf %45, %cst_41 : f32
      %47 = vector.broadcast %40 : f32 to vector<1x4x1xf32>
      %48 = arith.mulf %44, %47 : vector<1x4x1xf32>
      %49 = vector.broadcast %41 : f32 to vector<1x4x1xf32>
      %50 = arith.mulf %39, %49 : vector<1x4x1xf32>
      %51 = arith.addf %48, %50 : vector<1x4x1xf32>
      %52 = arith.subf %36, %43 : vector<1x4x1xf32>
      %53 = arith.mulf %52, %52 : vector<1x4x1xf32>
      %54 = arith.mulf %40, %41 : f32
      %55 = arith.divf %54, %46 : f32
      %56 = vector.broadcast %55 : f32 to vector<1x4x1xf32>
      %57 = arith.mulf %53, %56 : vector<1x4x1xf32>
      %58 = arith.addf %51, %57 : vector<1x4x1xf32>
      %59 = vector.broadcast %46 : f32 to vector<1x4x1xf32>
      %60 = arith.divf %58, %59 : vector<1x4x1xf32>
      %61 = vector.broadcast %40 : f32 to vector<1x4x1xf32>
      %62 = arith.mulf %61, %43 : vector<1x4x1xf32>
      %63 = vector.broadcast %41 : f32 to vector<1x4x1xf32>
      %64 = arith.mulf %63, %36 : vector<1x4x1xf32>
      %65 = arith.addf %62, %64 : vector<1x4x1xf32>
      %66 = vector.broadcast %46 : f32 to vector<1x4x1xf32>
      %67 = arith.divf %65, %66 : vector<1x4x1xf32>
      %68 = vector.broadcast %42 : f32 to vector<1x4x1xf32>
      %69 = arith.maximumf %60, %68 : vector<1x4x1xf32>
      %70 = math.rsqrt %69 : vector<1x4x1xf32>
      %c0_42 = arith.constant 0 : index
      %c0_43 = arith.constant 0 : index
      %c0_44 = arith.constant 0 : index
      %71 = vector.load %arg7[%c0_42, %c0_43, %c0_44] : memref<1x4x1xf32, #tpu.memory_space<vmem>>, vector<1x4x1xf32>
      tpu.vector_store %arg7[%c0_42, %c0_43, %c0_44], %67 {strides = array<i32>} : memref<1x4x1xf32, #tpu.memory_space<vmem>>, vector<1x4x1xf32>,
      %c0_45 = arith.constant 0 : index
      %c0_46 = arith.constant 0 : index
      %c0_47 = arith.constant 0 : index
      %72 = vector.load %arg8[%c0_45, %c0_46, %c0_47] : memref<1x4x1xf32, #tpu.memory_space<vmem>>, vector<1x4x1xf32>
      tpu.vector_store %arg8[%c0_45, %c0_46, %c0_47], %60 {strides = array<i32>} : memref<1x4x1xf32, #tpu.memory_space<vmem>>, vector<1x4x1xf32>,
      %c0_48 = arith.constant 0 : index
      %c0_49 = arith.constant 0 : index
      %c0_50 = arith.constant 0 : index
      %73 = vector.load %arg9[%c0_48, %c0_49, %c0_50] : memref<1x4x1xf32, #tpu.memory_space<vmem>>, vector<1x4x1xf32>
      tpu.vector_store %arg9[%c0_48, %c0_49, %c0_50], %70 {strides = array<i32>} : memref<1x4x1xf32, #tpu.memory_space<vmem>>, vector<1x4x1xf32>,
      %cst_51 = arith.constant 0.000000e+00 : f32
      %74 = vector.broadcast %cst_51 : f32 to vector<1x4x1xf32>
      %75 = arith.subf %74, %67 : vector<1x4x1xf32>
      %76 = arith.mulf %75, %70 : vector<1x4x1xf32>
      %c0_52 = arith.constant 0 : index
      %c0_53 = arith.constant 0 : index
      %c0_54 = arith.constant 0 : index
      %77 = vector.load %arg10[%c0_52, %c0_53, %c0_54] : memref<1x4x1xf32, #tpu.memory_space<vmem>>, vector<1x4x1xf32>
      tpu.vector_store %arg10[%c0_52, %c0_53, %c0_54], %76 {strides = array<i32>} : memref<1x4x1xf32, #tpu.memory_space<vmem>>, vector<1x4x1xf32>,
      %c0_55 = arith.constant 0 : index
      %78 = memref.load %arg11[%c0_55] : memref<1xf32, #tpu.memory_space<smem>>
      memref.store %45, %arg11[%c0_55] : memref<1xf32, #tpu.memory_space<smem>>
    } else {
    }
    return
  }
  func.func @transform_0(%arg0: i32) -> (i32, i32, i32) {
    %c0_i32 = arith.constant 0 : i32
    %c0_i32_0 = arith.constant 0 : i32
    %c0_i32_1 = arith.constant 0 : i32
    return %c0_i32, %c0_i32_0, %arg0 : i32, i32, i32
  }
  func.func @transform_1(%arg0: i32) -> (i32, i32, i32) {
    %c0_i32 = arith.constant 0 : i32
    %c0_i32_0 = arith.constant 0 : i32
    %c0_i32_1 = arith.constant 0 : i32
    %c0_i32_2 = arith.constant 0 : i32
    return %c0_i32, %c0_i32_0, %c0_i32_1 : i32, i32, i32
  }
  func.func @transform_2(%arg0: i32) -> (i32, i32, i32) {
    %c0_i32 = arith.constant 0 : i32
    %c0_i32_0 = arith.constant 0 : i32
    %c0_i32_1 = arith.constant 0 : i32
    %c0_i32_2 = arith.constant 0 : i32
    return %c0_i32, %c0_i32_0, %c0_i32_1 : i32, i32, i32
  }
  func.func @transform_3(%arg0: i32) -> i32 {
    %c0_i32 = arith.constant 0 : i32
    %c0_i32_0 = arith.constant 0 : i32
    return %c0_i32 : i32
  }
  func.func @transform_4(%arg0: i32) -> i32 {
    %c0_i32 = arith.constant 0 : i32
    %c0_i32_0 = arith.constant 0 : i32
    return %c0_i32 : i32
  }
  func.func @transform_5(%arg0: i32) -> i32 {
    %c0_i32 = arith.constant 0 : i32
    %c0_i32_0 = arith.constant 0 : i32
    return %c0_i32 : i32
  }
  func.func @transform_6(%arg0: i32) -> (i32, i32, i32) {
    %c0_i32 = arith.constant 0 : i32
    %c0_i32_0 = arith.constant 0 : i32
    %c0_i32_1 = arith.constant 0 : i32
    %c0_i32_2 = arith.constant 0 : i32
    return %c0_i32, %c0_i32_0, %c0_i32_1 : i32, i32, i32
  }
  func.func @transform_7(%arg0: i32) -> (i32, i32, i32) {
    %c0_i32 = arith.constant 0 : i32
    %c0_i32_0 = arith.constant 0 : i32
    %c0_i32_1 = arith.constant 0 : i32
    %c0_i32_2 = arith.constant 0 : i32
    return %c0_i32, %c0_i32_0, %c0_i32_1 : i32, i32, i32
  }
  func.func @transform_8(%arg0: i32) -> (i32, i32, i32) {
    %c0_i32 = arith.constant 0 : i32
    %c0_i32_0 = arith.constant 0 : i32
    %c0_i32_1 = arith.constant 0 : i32
    %c0_i32_2 = arith.constant 0 : i32
    return %c0_i32, %c0_i32_0, %c0_i32_1 : i32, i32, i32
  }
  func.func @transform_9(%arg0: i32) -> (i32, i32, i32) {
    %c0_i32 = arith.constant 0 : i32
    %c0_i32_0 = arith.constant 0 : i32
    %c0_i32_1 = arith.constant 0 : i32
    %c0_i32_2 = arith.constant 0 : i32
    return %c0_i32, %c0_i32_0, %c0_i32_1 : i32, i32, i32
  }
  func.func @transform_10(%arg0: i32) -> i32 {
    %c0_i32 = arith.constant 0 : i32
    %c0_i32_0 = arith.constant 0 : i32
    return %c0_i32 : i32
  }
}

</mosaic_0001>

<llo_original>
// kernel: tpu_custom_call.1
$region0: #{tpu_custom_call.1}
  #allocation0 [shape = 'u32[]', space=smem, size = 0x4, offset = 0x4, fixed_abs, tag = 'smem constant byte address 0x4 - core index']
  #allocation1 [shape = 'u32[72,128]{1,0:T(1,128)}', space=vmem, size = 0x9000, scoped, tag = 'internal scratch']
  #allocation2 [shape = 'f32[1,4,1]{2,1,0:T(4,128)}', space=vmem, size = 0x800, scoped, tag = 'scratch operand']
  #allocation3 [shape = 'f32[1,4,1]{2,1,0:T(4,128)}', space=vmem, size = 0x800, scoped, tag = 'scratch operand']
  #allocation4 [shape = 'f32[1]{0:T(128)S(6)}', space=smem, size = 0x200, scoped, tag = 'scoped memory for tpu_custom_call.1']
  #allocation5 [shape = 'f32[1]{0:T(128)S(6)}', space=smem, size = 0x200, scoped, tag = 'scoped memory for tpu_custom_call.1']
  #allocation6 [shape = 'f32[1]{0:T(128)S(6)}', space=smem, size = 0x200, scoped, tag = 'scoped memory for tpu_custom_call.1']
  %s0 = inlined_call_operand.hbm [shape: f32[2,4,256], index: 0, kind: input, shape index: {}]
  %s1 = inlined_call_operand.vmem [shape: f32[1,4,1], index: 1, kind: input, shape index: {}]
  %s2 = inlined_call_operand.vmem [shape: f32[1,4,1], index: 2, kind: input, shape index: {}]
  %s3 = inlined_call_operand.<no memory space> [shape: f32[1], index: 3, kind: input, shape index: {}]
  %s4 = inlined_call_operand.<no memory space> [shape: f32[1], index: 4, kind: input, shape index: {}]
  %s5 = inlined_call_operand.<no memory space> [shape: f32[1], index: 5, kind: input, shape index: {}]
  %s6 = inlined_call_operand.vmem [shape: f32[1,4,1], index: 6, kind: output, shape index: {0}]
  %s7 = inlined_call_operand.vmem [shape: f32[1,4,1], index: 7, kind: output, shape index: {1}]
  %s8 = inlined_call_operand.vmem [shape: f32[1,4,1], index: 8, kind: output, shape index: {2}]
  %s9 = inlined_call_operand.vmem [shape: f32[1,4,1], index: 9, kind: output, shape index: {3}]
  %s10 = inlined_call_operand.hbm [shape: f32[1], index: 10, kind: output, shape index: {4}]
  %11 = xla_tuple %s6, %s7, %s8, %s9, %s10
  %s12 = sld [smem:[#allocation0]]
  $region78: #{tpu_custom_call.1} parent=0
    _
  %s14 = ssub.s32 1, %s12
  %s15 = scalar_select 0, %s14, %s12
  %16 = sst [smem:[#allocation4]] %s3
  %17 = sst [smem:[#allocation5]] %s4
  %18 = sst [smem:[#allocation6]] %s5
  $region1: #{tpu_custom_call.1} parent=0
    #allocation7 [shape = 'u8[8192]{0}', space=vmem, size = 0x2000, scoped, tag = 'input window, operand 0, single buffered']
    #allocation8 [shape = 's32[1]{0}', space=sflag, size = 0x4, scoped, tag = 'scoped memory for tpu_custom_call.1']
    #allocation9 [shape = 's32[1]{0}', space=sflag, size = 0x4, scoped, tag = 'scoped memory for tpu_custom_call.1']
    #allocation10 [shape = 'u8[512]{0}', space=smem, size = 0x200, scoped, tag = 'output window, operand 4, single buffered']
    %19 = vsyncpa [#allocation8], 0
    %20 = vsyncpa [#allocation9], 0
    // Predicated region
    $region2: #{tpu_custom_call.1} parent=1 // pred_check
      _
    $region3: #{tpu_custom_call.1} parent=1 // pred_check_branch
      %22 = sbr.rel (0) target = $region5
    $region4: #{tpu_custom_call.1} parent=1 // pred_region
      %24 = vsyncadd [#allocation8], 0
      %s25 = sshll.u32 %s0, 4
      %s26 = int_to_ptr.hbm [resolvable:$true] %s25
      %s27 = sshll.u32 [#allocation7], 4
      %s28 = int_to_ptr.vmem [resolvable:$true] %s27
      %33 = dma.hbm_to_vmem [thread:$0]  %s26, 256, %s28, [#allocation8], 128, 128, 8
    $region5: #{tpu_custom_call.1} parent=1 // pred_fallthru
      _
    // Predicated region
    $region6: #{tpu_custom_call.1} parent=1 // pred_check
      _
    $region7: #{tpu_custom_call.1} parent=1 // pred_check_branch
      %35 = sbr.rel (0) target = $region9
    $region8: #{tpu_custom_call.1} parent=1 // pred_region
      _
    $region9: #{tpu_custom_call.1} parent=1 // pred_fallthru
      _
    // Predicated region
    $region10: #{tpu_custom_call.1} parent=1 // pred_check
      _
    $region11: #{tpu_custom_call.1} parent=1 // pred_check_branch
      %37 = sbr.rel (0) target = $region13
    $region12: #{tpu_custom_call.1} parent=1 // pred_region
      _
    $region13: #{tpu_custom_call.1} parent=1 // pred_fallthru
      _
    // Predicated region
    $region14: #{tpu_custom_call.1} parent=1 // pred_check
      _
    $region15: #{tpu_custom_call.1} parent=1 // pred_check_branch
      %39 = sbr.rel (0) target = $region17
    $region16: #{tpu_custom_call.1} parent=1 // pred_region
      _
    $region17: #{tpu_custom_call.1} parent=1 // pred_fallthru
      _
    // Predicated region
    $region18: #{tpu_custom_call.1} parent=1 // pred_check
      _
    $region19: #{tpu_custom_call.1} parent=1 // pred_check_branch
      %41 = sbr.rel (0) target = $region21
    $region20: #{tpu_custom_call.1} parent=1 // pred_region
      _
    $region21: #{tpu_custom_call.1} parent=1 // pred_fallthru
      _
    // Predicated region
    $region22: #{tpu_custom_call.1} parent=1 // pred_check
      _
    $region23: #{tpu_custom_call.1} parent=1 // pred_check_branch
      %43 = sbr.rel (0) target = $region25
    $region24: #{tpu_custom_call.1} parent=1 // pred_region
      _
    $region25: #{tpu_custom_call.1} parent=1 // pred_fallthru
      _
    // Predicated region
    $region26: #{tpu_custom_call.1} parent=1 // pred_check
      _
    $region27: #{tpu_custom_call.1} parent=1 // pred_check_branch
      %45 = sbr.rel (0) target = $region29
    $region28: #{tpu_custom_call.1} parent=1 // pred_region
      %47 = dma.done [#allocation8], 256
    $region29: #{tpu_custom_call.1} parent=1 // pred_fallthru
      _
    %p48 = scmp.eq.s32.totalorder 0, 0
    // Predicated region
    $region30: #{tpu_custom_call.1} parent=1 // pred_check
      %p49 = pneg %p48
    $region31: #{tpu_custom_call.1} parent=1 // pred_check_branch
      %51 = sbr.rel (%p49) target = $region33
    $region32: #{tpu_custom_call.1} parent=1 // pred_region
      %vm52 = vcmask 3072
      %53 = vst.msk [vmem:[#allocation2] sm:$0xf] %vm52, 0.0
      %54 = vst.msk [vmem:[#allocation3] sm:$0xf] %vm52, 0.0
    $region33: #{tpu_custom_call.1} parent=1 // pred_fallthru
      _
    %v55 = vld [vmem:[#allocation7] sm:$0xff]
    %v56 = vld [vmem:[#allocation7 + $0x8] sm:$0xff]
    %59 = vst [vmem:[#allocation1] ss:$2 sm:$0xff] %v55
    %v60 = vld.sshfl [vmem:[#allocation1] sm:$0xff pattern:$0x75316420]
    %v61 = vld.sshfl [vmem:[#allocation1 + $0x8] sm:$0xff pattern:$0x75316420]
    %s62 = scalar_lea.vmem [#allocation1], 16
    %63 = vst [vmem:[%s62] ss:$2 sm:$0xff] %v56
    %v64 = vld.sshfl [vmem:[#allocation1 + $0x10] sm:$0xff pattern:$0x75316420]
    %v65 = vld.sshfl [vmem:[#allocation1 + $0x18] sm:$0xff pattern:$0x75316420]
    %vm70 = vcmask 1043456
    %v71 = vsel %vm70, %v60, 0.0
    %v72 = vsel %vm70, %v61, 0.0
    %v73 = vadd.f32 %v71, %v72
    %v74 = vsel %vm70, %v64, 0.0
    %v75 = vadd.f32 %v73, %v74
    %v76 = vsel %vm70, %v65, 0.0
    %v77 = vadd.f32 %v75, %v76
    %78 = vadd.xlane.f32.xlu0 %v77
    %v79 = vpop.xlane.xlu0 %78
    %v80 = vrcp.pop 512.0
    %v81 = vmul.f32 512.0, %v80
    %v82 = vsub.f32 1.0, %v81
    %v83 = vmul.f32 %v80, %v82
    %v84 = vadd.f32 %v80, %v83
    %vm85 = vweird.f32 %v80
    %v86 = vsel %vm85, %v80, %v84
    %v87 = vmul.f32 %v79, %v86
    %v90 = vunpack.c.l.s4 839922192
    %v91 = vunpack.c.0.s8 %v90
    %v92 = vperm.slane %v87, %v91
    %v94 = vsub.f32 %v55, %v92
    %v95 = vsub.f32 %v56, %v92
    %v96 = vmul.f32 %v94, %v94
    %v97 = vmul.f32 %v95, %v95
    %100 = vst [vmem:[#allocation1] ss:$2 sm:$0xff] %v96
    %v101 = vld.sshfl [vmem:[#allocation1] sm:$0xff pattern:$0x75316420]
    %v102 = vld.sshfl [vmem:[#allocation1 + $0x8] sm:$0xff pattern:$0x75316420]
    %s103 = scalar_lea.vmem [#allocation1], 16
    %104 = vst [vmem:[%s103] ss:$2 sm:$0xff] %v97
    %v105 = vld.sshfl [vmem:[#allocation1 + $0x10] sm:$0xff pattern:$0x75316420]
    %v106 = vld.sshfl [vmem:[#allocation1 + $0x18] sm:$0xff pattern:$0x75316420]
    %v111 = vsel %vm70, %v101, 0.0
    %v112 = vsel %vm70, %v102, 0.0
    %v113 = vadd.f32 %v111, %v112
    %v114 = vsel %vm70, %v105, 0.0
    %v115 = vadd.f32 %v113, %v114
    %v116 = vsel %vm70, %v106, 0.0
    %v117 = vadd.f32 %v115, %v116
    %118 = vadd.xlane.f32.xlu0 %v117
    %v119 = vpop.xlane.xlu0 %118
    %s120 = scvt.s32.f32 0
    %s121 = smul.f32 %s120, 512.0
    %s122 = sadd.f32 %s121, 512.0
    %v123 = vld [vmem:[#allocation2] sm:$0xf]
    %v124 = vsub.f32 %v87, %v123
    %v125 = vld [vmem:[#allocation3] sm:$0xf]
    %v126 = vadd.f32 %v125, %v119
    %v127 = vmul.f32 %v124, %v124
    %s128 = smul.f32 %s121, 512.0
    %v129 = vstv %s122
    %v130 = vrcp.pop %v129
    %v131 = vmul.f32 %v129, %v130
    %v132 = vsub.f32 1.0, %v131
    %v133 = vmul.f32 %v130, %v132
    %v134 = vadd.f32 %v130, %v133
    %vm135 = vweird.f32 %v129
    %vm136 = vweird.f32 %v130
    %vm137 = vmor %vm135, %vm136
    %v138 = vsel %vm137, %v130, %v134
    %v139 = vand.u32 2147483647, %v129
    %vm140 = vcmp.eq.f32.partialorder %v139, 8.507059e+37
    %v141 = vand.u32 %v129, 2147483648
    %v142 = vor.u32 1.1754944e-38, %v141
    %v143 = vsel %vm140, %v142, %v138
    %s144 = vtos %v143
    %s145 = smul.f32 %s128, %s144
    %v146 = vstv %s145
    %v147 = vmul.f32 %v127, %v146
    %v148 = vadd.f32 %v126, %v147
    %vm149 = vcmask 3072
    %150 = vst.msk [vmem:[#allocation3] sm:$0xf] %vm149, %v148
    %v151 = vld [vmem:[#allocation2] sm:$0xf]
    %v152 = vstv %s122
    %v153 = vrcp.pop %v152
    %v154 = vmul.f32 %v152, %v153
    %v155 = vsub.f32 1.0, %v154
    %v156 = vmul.f32 %v153, %v155
    %v157 = vadd.f32 %v153, %v156
    %vm158 = vweird.f32 %v152
    %vm159 = vweird.f32 %v153
    %vm160 = vmor %vm158, %vm159
    %v161 = vsel %vm160, %v153, %v157
    %v162 = vand.u32 2147483647, %v152
    %vm163 = vcmp.eq.f32.partialorder %v162, 8.507059e+37
    %v164 = vand.u32 %v152, 2147483648
    %v165 = vor.u32 1.1754944e-38, %v164
    %v166 = vsel %vm163, %v165, %v161
    %s167 = vtos %v166
    %s168 = smul.f32 512.0, %s167
    %v169 = vstv %s168
    %v170 = vmul.f32 %v124, %v169
    %v171 = vadd.f32 %v151, %v170
    %172 = vst.msk [vmem:[#allocation2] sm:$0xf] %vm149, %v171
    // Predicated region
    $region34: #{tpu_custom_call.1} parent=1 // pred_check
      %p173 = pneg %p48
    $region35: #{tpu_custom_call.1} parent=1 // pred_check_branch
      %175 = sbr.rel (%p173) target = $region37
    $region36: #{tpu_custom_call.1} parent=1 // pred_region
      %v176 = vld [vmem:[#allocation2] sm:$0xf]
      %v177 = vld [vmem:[#allocation3] sm:$0xf]
      %v178 = vstv %s122
      %v179 = vrcp.pop %v178
      %v180 = vmul.f32 %v178, %v179
      %v181 = vsub.f32 1.0, %v180
      %v182 = vmul.f32 %v179, %v181
      %v183 = vadd.f32 %v179, %v182
      %vm184 = vweird.f32 %v178
      %vm185 = vweird.f32 %v179
      %vm186 = vmor %vm184, %vm185
      %v187 = vsel %vm186, %v179, %v183
      %v188 = vand.u32 2147483647, %v178
      %vm189 = vcmp.eq.f32.partialorder %v188, 8.507059e+37
      %v190 = vand.u32 %v178, 2147483648
      %v191 = vor.u32 1.1754944e-38, %v190
      %v192 = vsel %vm189, %v191, %v187
      %v193 = vmul.f32 %v177, %v192
      %s194 = sld [smem:[#allocation4]]
      %s195 = sld [smem:[#allocation6]]
      %s196 = sld [smem:[#allocation5]]
      %v197 = vld [vmem:[%s1] sm:$0xf]
      %v198 = vld [vmem:[%s2] sm:$0xf]
      %s199 = sadd.f32 %s194, %s195
      %s200 = smax.f32 %s199, 1e-20
      %v201 = vstv %s194
      %v202 = vmul.f32 %v198, %v201
      %v203 = vstv %s195
      %v204 = vmul.f32 %v193, %v203
      %v205 = vadd.f32 %v202, %v204
      %v206 = vsub.f32 %v176, %v197
      %v207 = vmul.f32 %v206, %v206
      %s208 = smul.f32 %s194, %s195
      %v209 = vstv %s200
      %v210 = vrcp.pop %v209
      %v211 = vmul.f32 %v209, %v210
      %v212 = vsub.f32 1.0, %v211
      %v213 = vmul.f32 %v210, %v212
      %v214 = vadd.f32 %v210, %v213
      %vm215 = vweird.f32 %v209
      %vm216 = vweird.f32 %v210
      %vm217 = vmor %vm215, %vm216
      %v218 = vsel %vm217, %v210, %v214
      %v219 = vand.u32 2147483647, %v209
      %vm220 = vcmp.eq.f32.partialorder %v219, 8.507059e+37
      %v221 = vand.u32 %v209, 2147483648
      %v222 = vor.u32 1.1754944e-38, %v221
      %v223 = vsel %vm220, %v222, %v218
      %s224 = vtos %v223
      %s225 = smul.f32 %s208, %s224
      %v226 = vstv %s225
      %v227 = vmul.f32 %v207, %v226
      %v228 = vadd.f32 %v205, %v227
      %v229 = vstv %s200
      %v230 = vrcp.pop %v229
      %v231 = vmul.f32 %v229, %v230
      %v232 = vsub.f32 1.0, %v231
      %v233 = vmul.f32 %v230, %v232
      %v234 = vadd.f32 %v230, %v233
      %vm235 = vweird.f32 %v229
      %vm236 = vweird.f32 %v230
      %vm237 = vmor %vm235, %vm236
      %v238 = vsel %vm237, %v230, %v234
      %v239 = vand.u32 2147483647, %v229
      %vm240 = vcmp.eq.f32.partialorder %v239, 8.507059e+37
      %v241 = vand.u32 %v229, 2147483648
      %v242 = vor.u32 1.1754944e-38, %v241
      %v243 = vsel %vm240, %v242, %v238
      %v244 = vmul.f32 %v228, %v243
      %v245 = vmul.f32 %v201, %v197
      %v246 = vmul.f32 %v203, %v176
      %v247 = vadd.f32 %v245, %v246
      %v248 = vmul.f32 %v247, %v243
      %v249 = vstv %s196
      %v250 = vmax.f32 %v244, %v249
      %v251 = vrsqrt.pop %v250
      %v252 = vmul.f32 %v251, %v250
      %v253 = vmul.f32 %v252, %v251
      %v254 = vmul.f32 0.5, %v253
      %v255 = vsub.f32 1.5, %v254
      %v256 = vmul.f32 %v251, %v255
      %vm257 = vweird.f32 %v250
      %vm258 = vweird.f32 %v251
      %vm259 = vmor %vm257, %vm258
      %v260 = vsel %vm259, %v251, %v256
      %261 = vst.msk [vmem:[%s6] sm:$0xf] %vm149, %v248
      %262 = vst.msk [vmem:[%s7] sm:$0xf] %vm149, %v244
      %263 = vst.msk [vmem:[%s8] sm:$0xf] %vm149, %v260
      %v264 = vsub.f32 0.0, %v248
      %v265 = vmul.f32 %v264, %v260
      %266 = vst.msk [vmem:[%s9] sm:$0xf] %vm149, %v265
      %s267 = scalar_lea.smem [#allocation10], 0
      %268 = sst [smem:[%s267]] %s199
    $region37: #{tpu_custom_call.1} parent=1 // pred_fallthru
      _
    // Predicated region
    $region38: #{tpu_custom_call.1} parent=1 // pred_check
      _
    $region39: #{tpu_custom_call.1} parent=1 // pred_check_branch
      %270 = sbr.rel (0) target = $region41
    $region40: #{tpu_custom_call.1} parent=1 // pred_region
      _
    $region41: #{tpu_custom_call.1} parent=1 // pred_fallthru
      _
    // Predicated region
    $region42: #{tpu_custom_call.1} parent=1 // pred_check
      _
    $region43: #{tpu_custom_call.1} parent=1 // pred_check_branch
      %272 = sbr.rel (0) target = $region45
    $region44: #{tpu_custom_call.1} parent=1 // pred_region
      _
    $region45: #{tpu_custom_call.1} parent=1 // pred_fallthru
      _
    // Predicated region
    $region46: #{tpu_custom_call.1} parent=1 // pred_check
      _
    $region47: #{tpu_custom_call.1} parent=1 // pred_check_branch
      %274 = sbr.rel (0) target = $region49
    $region48: #{tpu_custom_call.1} parent=1 // pred_region
      _
    $region49: #{tpu_custom_call.1} parent=1 // pred_fallthru
      _
    // Predicated region
    $region50: #{tpu_custom_call.1} parent=1 // pred_check
      _
    $region51: #{tpu_custom_call.1} parent=1 // pred_check_branch
      %276 = sbr.rel (0) target = $region53
    $region52: #{tpu_custom_call.1} parent=1 // pred_region
      _
    $region53: #{tpu_custom_call.1} parent=1 // pred_fallthru
      _
    // Predicated region
    $region54: #{tpu_custom_call.1} parent=1 // pred_check
      _
    $region55: #{tpu_custom_call.1} parent=1 // pred_check_branch
      %278 = sbr.rel (0) target = $region57
    $region56: #{tpu_custom_call.1} parent=1 // pred_region
      %280 = vsyncadd [#allocation9], 0
      %s282 = sshll.u32 %s10, 4
      %s283 = int_to_ptr.hbm [resolvable:$true] %s282
      %285 = dma.smem_to_hbm [#allocation10], 16, %s283, [#allocation9]
    $region57: #{tpu_custom_call.1} parent=1 // pred_fallthru
      _
    // Predicated region
    $region58: #{tpu_custom_call.1} parent=1 // pred_check
      _
    $region59: #{tpu_custom_call.1} parent=1 // pred_check_branch
      %287 = sbr.rel (0) target = $region61
    $region60: #{tpu_custom_call.1} parent=1 // pred_region
      _
    $region61: #{tpu_custom_call.1} parent=1 // pred_fallthru
      _
    // Predicated region
    $region62: #{tpu_custom_call.1} parent=1 // pred_check
      _
    $region63: #{tpu_custom_call.1} parent=1 // pred_check_branch
      %289 = sbr.rel (0) target = $region65
    $region64: #{tpu_custom_call.1} parent=1 // pred_region
      _
    $region65: #{tpu_custom_call.1} parent=1 // pred_fallthru
      _
    // Predicated region
    $region66: #{tpu_custom_call.1} parent=1 // pred_check
      _
    $region67: #{tpu_custom_call.1} parent=1 // pred_check_branch
      %291 = sbr.rel (0) target = $region69
    $region68: #{tpu_custom_call.1} parent=1 // pred_region
      _
    $region69: #{tpu_custom_call.1} parent=1 // pred_fallthru
      _
    // Predicated region
    $region70: #{tpu_custom_call.1} parent=1 // pred_check
      _
    $region71: #{tpu_custom_call.1} parent=1 // pred_check_branch
      %293 = sbr.rel (0) target = $region73
    $region72: #{tpu_custom_call.1} parent=1 // pred_region
      _
    $region73: #{tpu_custom_call.1} parent=1 // pred_fallthru
      _
    // Predicated region
    $region74: #{tpu_custom_call.1} parent=1 // pred_check
      _
    $region75: #{tpu_custom_call.1} parent=1 // pred_check_branch
      %295 = sbr.rel (0) target = $region77
    $region76: #{tpu_custom_call.1} parent=1 // pred_region
      %297 = dma.done [#allocation9], 16
    $region77: #{tpu_custom_call.1} parent=1 // pred_fallthru
      _
    %298 = sfence
    %299 = vsyncpa [#allocation8], 1
    %300 = vsyncpa [#allocation9], 1

</llo_original>
